<compile_context>
chip_gen: v5e
topology: v5e:2x2
jax: 0.10.0
libtpu: 0.0.40
codegen_flags: <defaults>
</compile_context>

<pallas_src>
import functools

import jax
import jax.numpy as jnp
import numpy as np
from jax import lax
from jax.experimental import pallas as pl
from jax.experimental.pallas import tpu as pltpu

EPS = 1e-5                       # torch.nn.BatchNorm2d default eps
_VMEM_LIMIT = 64 * 1024 * 1024   # safe on v5e/v6e (128 MiB phys) and v7x (64 MiB)


def _pick_tile_m(M, cap=1024):
    """Largest row tile (multiple of 8) dividing M, capped; M itself if small."""
    if M <= cap:
        return M
    for t in (1024, 512, 256, 128, 64, 32, 16, 8):
        if t <= cap and M % t == 0:
            return t
    return M   # fallback: single block


# ----------------------------- Pallas kernels ------------------------------

def _mm_kernel(x_ref, w_ref, b_ref, o_ref, *, act):
    """y = act(x @ w + b).  x:(TM,Cin)  w:(Cin,Cout)  b:(1,Cout), f32 accum."""
    y = jnp.dot(x_ref[...], w_ref[...], preferred_element_type=jnp.float32)
    y = y + b_ref[...]
    if act == "relu":
        y = jnp.maximum(y, 0.0)
    elif act == "gelu":
        y = jax.nn.gelu(y, approximate=False)   # matches torch nn.GELU()
    o_ref[...] = y.astype(o_ref.dtype)


def pointwise(x_flat, w, b, act="none"):
    """1x1 conv (+BN folded) as an M-tiled matmul."""
    M, Cin = x_flat.shape
    Cout = w.shape[1]
    tm = _pick_tile_m(M, cap=1024)
    isz = jnp.dtype(x_flat.dtype).itemsize
    return pl.pallas_call(
        functools.partial(_mm_kernel, act=act),
        out_shape=jax.ShapeDtypeStruct((M, Cout), x_flat.dtype),
        grid=(M // tm,),
        in_specs=[
            pl.BlockSpec((tm, Cin), lambda i: (i, 0)),
            pl.BlockSpec((Cin, Cout), lambda i: (0, 0)),
            pl.BlockSpec((1, Cout), lambda i: (0, 0)),
        ],
        out_specs=pl.BlockSpec((tm, Cout), lambda i: (i, 0)),
        compiler_params=pltpu.CompilerParams(
            dimension_semantics=("parallel",),
            vmem_limit_bytes=_VMEM_LIMIT),
        cost_estimate=pl.CostEstimate(
            flops=2 * M * Cin * Cout,
            transcendentals=(M * Cout) if act == "gelu" else 0,
            bytes_accessed=(M * Cin + M * Cout + Cin * Cout) * isz),
    )(x_flat, w, b)


def _ffn_kernel(x_ref, w1_ref, b1_ref, w2_ref, b2_ref, o_ref):
    """Fused ConvFFN tile: x -> pw1 -> GELU -> pw2 -> + residual."""
    x = x_ref[...]
    h = jnp.dot(x, w1_ref[...], preferred_element_type=jnp.float32) + b1_ref[...]
    h = jax.nn.gelu(h, approximate=False)
    y = jnp.dot(h.astype(w2_ref.dtype), w2_ref[...],
                preferred_element_type=jnp.float32)
    y = y + b2_ref[...] + x.astype(jnp.float32)
    o_ref[...] = y.astype(o_ref.dtype)


def ffn_fused(x_flat, w1, b1, w2, b2):
    M, C = x_flat.shape
    I = w1.shape[1]
    tm = _pick_tile_m(M, cap=512)   # (tm, 4C) hidden stays in VMEM/vregs
    isz = jnp.dtype(x_flat.dtype).itemsize
    return pl.pallas_call(
        _ffn_kernel,
        out_shape=jax.ShapeDtypeStruct((M, C), x_flat.dtype),
        grid=(M // tm,),
        in_specs=[
            pl.BlockSpec((tm, C), lambda i: (i, 0)),
            pl.BlockSpec((C, I), lambda i: (0, 0)),
            pl.BlockSpec((1, I), lambda i: (0, 0)),
            pl.BlockSpec((I, C), lambda i: (0, 0)),
            pl.BlockSpec((1, C), lambda i: (0, 0)),
        ],
        out_specs=pl.BlockSpec((tm, C), lambda i: (i, 0)),
        compiler_params=pltpu.CompilerParams(
            dimension_semantics=("parallel",),
            vmem_limit_bytes=_VMEM_LIMIT),
        cost_estimate=pl.CostEstimate(
            flops=4 * M * C * I,
            transcendentals=M * I,
            bytes_accessed=(2 * M * C + 2 * C * I) * isz),
    )(x_flat, w1, b1, w2, b2)


def _dw_pw2_res_kernel(xp_ref, wdw_ref, bdw_ref, w2_ref, b2_ref, res_ref, o_ref,
                       *, K, H, W, ROWS):
    """Per-image fused: 29x29 depthwise (merged branches) -> ReLU -> pw2 ->
    + residual.
      xp_ref : (Hp, Wp, D)   padded pw1 output (channels-last)
      wdw_ref: (K, K, D)     merged depthwise taps (BN folded), f32
      bdw_ref: (1, D)        merged depthwise bias, f32
      w2_ref : (D, C), b2_ref: (1, C)
      res_ref: (H*W, C)      block input (residual), o_ref: (H*W, C)
    """
    D = xp_ref.shape[-1]
    w2 = w2_ref[...]
    b2 = b2_ref[...]
    bdw = bdw_ref[...]

    for s in range(H // ROWS):                     # strip-mined accumulator
        h0 = s * ROWS

        def kh_body(kh, acc):
            # one padded row-slab per kh (dynamic major-dim offset, loaded once)
            slab = xp_ref[pl.ds(h0 + kh, ROWS), :, :].astype(jnp.float32)
            wrow = wdw_ref[kh]                     # (K, D)
            for kw in range(K):                    # static offsets -> cheap slices
                acc = acc + slab[:, kw:kw + W, :] * wrow[kw:kw + 1, :]
            return acc

        acc = lax.fori_loop(0, K, kh_body,
                            jnp.zeros((ROWS, W, D), jnp.float32))
        t = jnp.maximum(acc + bdw, 0.0)            # lk_nonlinear (ReLU)
        y = jnp.dot(t.reshape(ROWS * W, D).astype(w2.dtype), w2,
                    preferred_element_type=jnp.float32) + b2
        r = res_ref[pl.ds(h0 * W, ROWS * W), :].astype(jnp.float32)
        o_ref[pl.ds(h0 * W, ROWS * W), :] = (r + y).astype(o_ref.dtype)


def replk_dw_pw2_residual(t_nhwc, res_flat, wdw, bdw, w2, b2, K):
    """t: (N,H,W,D) pw1 output; res_flat: (N,H*W,C) block input. -> (N,H*W,C)."""
    N, H, W, D = t_nhwc.shape
    C = w2.shape[1]
    HW = H * W
    p = K // 2
    # TODO(synk): halo is still materialized host-side by jnp.pad; in-kernel
    # masked edge taps would cut this HBM read further for small images.
    xp = jnp.pad(t_nhwc, ((0, 0), (p, p), (p, p), (0, 0)))
    Hp, Wp = H + 2 * p, W + 2 * p
    ROWS = 8 if H % 8 == 0 else H
    isz = jnp.dtype(t_nhwc.dtype).itemsize
    return pl.pallas_call(
        functools.partial(_dw_pw2_res_kernel, K=K, H=H, W=W, ROWS=ROWS),
        out_shape=jax.ShapeDtypeStruct((N, HW, C), t_nhwc.dtype),
        grid=(N,),
        in_specs=[
            pl.BlockSpec((pl.Squeezed(), Hp, Wp, D), lambda n: (n, 0, 0, 0)),
            pl.BlockSpec((K, K, D), lambda n: (0, 0, 0)),
            pl.BlockSpec((1, D), lambda n: (0, 0)),
            pl.BlockSpec((D, C), lambda n: (0, 0)),
            pl.BlockSpec((1, C), lambda n: (0, 0)),
            pl.BlockSpec((pl.Squeezed(), HW, C), lambda n: (n, 0, 0)),
        ],
        out_specs=pl.BlockSpec((pl.Squeezed(), HW, C), lambda n: (n, 0, 0)),
        compiler_params=pltpu.CompilerParams(
            dimension_semantics=("parallel",),
            vmem_limit_bytes=_VMEM_LIMIT),
        cost_estimate=pl.CostEstimate(
            flops=2 * N * HW * D * K * K + 2 * N * HW * D * C,
            transcendentals=0,
            bytes_accessed=(N * Hp * Wp * D + 2 * N * HW * C) * isz),
    )(xp, wdw, bdw, w2, b2, res_flat)


def _dw3s2_kernel(s00_ref, s01_ref, s10_ref, s11_ref, w_ref, b_ref, o_ref,
                  *, Ho, Wo):
    """3x3 stride-2 depthwise + BN + ReLU from 4 parity slabs (per image).
    s??_ref: (Ho+1, Wo+1, C), w_ref: (3,3,C), b_ref: (1,C), o_ref: (Ho,Wo,C)."""
    slabs = ((s00_ref, s01_ref), (s10_ref, s11_ref))
    w = w_ref[...]
    acc = jnp.zeros(o_ref.shape, jnp.float32)
    for kh in range(3):
        for kw in range(3):
            src = slabs[kh % 2][kw % 2]
            patch = src[kh // 2:kh // 2 + Ho, kw // 2:kw // 2 + Wo, :]
            acc = acc + patch.astype(jnp.float32) * w[kh, kw:kw + 1, :]
    y = jnp.maximum(acc + b_ref[...], 0.0)
    o_ref[...] = y.astype(o_ref.dtype)


def depthwise3_s2(x, w_taps, b):
    """x: NHWC (H,W even), w_taps: (3,3,C), b: (1,C). stride 2, pad 1, BN+ReLU."""
    N, H, W, C = x.shape
    assert H % 2 == 0 and W % 2 == 0, "transition expects even spatial dims"
    Ho, Wo = H // 2, W // 2
    xp = jnp.pad(x, ((0, 0), (1, 1), (1, 1), (0, 0)))
    # parity decomposition: ~1x the input traffic vs. 9x per-tap gathering
    s00 = xp[:, 0::2, 0::2, :]
    s01 = xp[:, 0::2, 1::2, :]
    s10 = xp[:, 1::2, 0::2, :]
    s11 = xp[:, 1::2, 1::2, :]
    Hs, Ws = Ho + 1, Wo + 1
    slab_spec = pl.BlockSpec((pl.Squeezed(), Hs, Ws, C), lambda n: (n, 0, 0, 0))
    return pl.pallas_call(
        functools.partial(_dw3s2_kernel, Ho=Ho, Wo=Wo),
        out_shape=jax.ShapeDtypeStruct((N, Ho, Wo, C), x.dtype),
        grid=(N,),
        in_specs=[slab_spec, slab_spec, slab_spec, slab_spec,
                  pl.BlockSpec((3, 3, C), lambda n: (0, 0, 0)),
                  pl.BlockSpec((1, C), lambda n: (0, 0))],
        out_specs=pl.BlockSpec((pl.Squeezed(), Ho, Wo, C),
                               lambda n: (n, 0, 0, 0)),
        compiler_params=pltpu.CompilerParams(
            dimension_semantics=("parallel",),
            vmem_limit_bytes=_VMEM_LIMIT),
    )(s00, s01, s10, s11, w_taps, b)


# ------------------------- parameter construction --------------------------

def make_bn(key, c):
    k1, k2, k3, k4 = jax.random.split(key, 4)
    return dict(
        gamma=jax.random.uniform(k1, (c,), jnp.float32, 0.5, 1.5),
        beta=0.1 * jax.random.normal(k2, (c,), jnp.float32),
        mean=0.1 * jax.random.normal(k3, (c,), jnp.float32),
        var=jax.random.uniform(k4, (c,), jnp.float32, 0.5, 1.5),
    )


def bn_scale_bias(bn):
    s = bn["gamma"] / jnp.sqrt(bn["var"] + EPS)
    return s, bn["beta"] - bn["mean"] * s


def fuse_conv_bn(w, bn):  # w: (Cout, Cin_per_group, kh, kw)
    s, b = bn_scale_bias(bn)
    return w * s[:, None, None, None], b


def make_replk_block(key, C, D, K_lk, K_sm):
    ks = jax.random.split(key, 9)
    pre_bn = make_bn(ks[0], C)
    pw1_w = 0.1 * jax.random.normal(ks[1], (D, C, 1, 1), jnp.float32)
    pw1_bn = make_bn(ks[2], D)
    lk_w = 0.1 * jax.random.normal(ks[3], (D, 1, K_lk, K_lk), jnp.float32)
    lk_bn = make_bn(ks[4], D)
    sm_w = 0.1 * jax.random.normal(ks[5], (D, 1, K_sm, K_sm), jnp.float32)
    sm_bn = make_bn(ks[6], D)
    pw2_w = 0.1 * jax.random.normal(ks[7], (C, D, 1, 1), jnp.float32)
    pw2_bn = make_bn(ks[8], C)

    s0, b0 = bn_scale_bias(pre_bn)
    W1, b1 = fuse_conv_bn(pw1_w, pw1_bn)
    Klk, blk = fuse_conv_bn(lk_w, lk_bn)
    Ksm, bsm = fuse_conv_bn(sm_w, sm_bn)
    W2, b2 = fuse_conv_bn(pw2_w, pw2_bn)

    # kernel-ready: fold prelkb_bn into pw1, merge the two depthwise branches
    Wm1 = W1[:, :, 0, 0].T                     # (C, D)
    w1 = s0[:, None] * Wm1
    b1f = b1 + b0 @ Wm1
    pad = (K_lk - K_sm) // 2
    Keq = Klk + jnp.pad(Ksm, ((0, 0), (0, 0), (pad, pad), (pad, pad)))
    beq = blk + bsm
    lk_taps = jnp.transpose(Keq[:, 0, :, :], (1, 2, 0))   # (K, K, D)
    Wm2 = W2[:, :, 0, 0].T                     # (D, C)

    return dict(
        kind="replk", K=K_lk,
        w1=w1, b1=b1f.reshape(1, -1),
        lk_w=lk_taps, lk_b=beq.reshape(1, -1),
        w2=Wm2, b2=b2.reshape(1, -1),
        ref=dict(s0=s0, b0=b0, W1=W1, b1=b1, Klk=Klk, blk=blk,
                 Ksm=Ksm, bsm=bsm, W2=W2, b2=b2, K_lk=K_lk, K_sm=K_sm),
    )


def make_convffn(key, C, I):
    ks = jax.random.split(key, 5)
    pre_bn = make_bn(ks[0], C)
    pw1_w = 0.1 * jax.random.normal(ks[1], (I, C, 1, 1), jnp.float32)
    pw1_bn = make_bn(ks[2], I)
    pw2_w = 0.1 * jax.random.normal(ks[3], (C, I, 1, 1), jnp.float32)
    pw2_bn = make_bn(ks[4], C)

    s0, b0 = bn_scale_bias(pre_bn)
    W1, b1 = fuse_conv_bn(pw1_w, pw1_bn)
    W2, b2 = fuse_conv_bn(pw2_w, pw2_bn)
    Wm1 = W1[:, :, 0, 0].T
    w1 = s0[:, None] * Wm1
    b1f = b1 + b0 @ Wm1
    Wm2 = W2[:, :, 0, 0].T
    return dict(
        kind="ffn",
        w1=w1, b1=b1f.reshape(1, -1), w2=Wm2, b2=b2.reshape(1, -1),
        ref=dict(s0=s0, b0=b0, W1=W1, b1=b1, W2=W2, b2=b2),
    )


def make_transition(key, C1, C2):
    ks = jax.random.split(key, 4)
    t1_w = 0.1 * jax.random.normal(ks[0], (C2, C1, 1, 1), jnp.float32)
    t1_bn = make_bn(ks[1], C2)
    t2_w = 0.1 * jax.random.normal(ks[2], (C2, 1, 3, 3), jnp.float32)
    t2_bn = make_bn(ks[3], C2)
    W1, b1 = fuse_conv_bn(t1_w, t1_bn)
    W2, b2 = fuse_conv_bn(t2_w, t2_bn)
    t2_taps = jnp.transpose(W2[:, 0, :, :], (1, 2, 0))    # (3, 3, C2)
    return dict(
        t1_w=W1[:, :, 0, 0].T, t1_b=b1.reshape(1, -1),
        t2_w=t2_taps, t2_b=b2.reshape(1, -1),
        ref=dict(W1=W1, b1=b1, W2=W2, b2=b2),
    )


def make_params(key, C1, C2, num_blocks=2, lk=29, sk=5, dw_ratio=1, ffn_ratio=4):
    keys = jax.random.split(key, 2 * num_blocks + 1)
    blocks = []
    for i in range(num_blocks):
        blocks.append(make_replk_block(keys[2 * i], C1, int(C1 * dw_ratio), lk, sk))
        blocks.append(make_convffn(keys[2 * i + 1], C1, int(C1 * ffn_ratio)))
    return dict(blocks=blocks, transition=make_transition(keys[-1], C1, C2))


# ------------------------------ forward (Pallas) ---------------------------

def run_replk_block(x, p, dt):            # x: NHWC, dtype dt
    N, H, W, C = x.shape
    xf = x.reshape(N * H * W, C)
    t = pointwise(xf, p["w1"].astype(dt), p["b1"], act="relu")   # prelkb_bn+pw1+ReLU
    D = p["w1"].shape[1]
    out = replk_dw_pw2_residual(
        t.reshape(N, H, W, D), xf.reshape(N, H * W, C),
        p["lk_w"], p["lk_b"], p["w2"].astype(dt), p["b2"], K=p["K"])
    return out.reshape(N, H, W, C)


def run_convffn(x, p, dt):
    N, H, W, C = x.shape
    xf = x.reshape(N * H * W, C)
    out = ffn_fused(xf, p["w1"].astype(dt), p["b1"],
                    p["w2"].astype(dt), p["b2"])
    return out.reshape(N, H, W, C)


def run_transition(x, p, dt):
    N, H, W, C = x.shape
    t = pointwise(x.reshape(N * H * W, C), p["t1_w"].astype(dt), p["t1_b"],
                  act="relu")
    C2 = p["t1_w"].shape[1]
    return depthwise3_s2(t.reshape(N, H, W, C2), p["t2_w"], p["t2_b"])


def forward(x_nchw, params, compute_dtype=jnp.float32):
    # TODO(synk): channel counts below 128 leave lanes idle / masked stores;
    # real RepLKNet stage2 channels (256/1024) are already lane-dense.
    x = jnp.transpose(x_nchw, (0, 2, 3, 1)).astype(compute_dtype)  # NCHW->NHWC
    for p in params["blocks"]:
        x = run_replk_block(x, p, compute_dtype) if p["kind"] == "replk" \
            else run_convffn(x, p, compute_dtype)
    x = run_transition(x, params["transition"], compute_dtype)
    return jnp.transpose(x, (0, 3, 1, 2))                           # NHWC->NCHW


# --------------------------- pure-JAX reference ----------------------------

def ref_pointwise(x, W, b):            # W: (Cout, Cin, 1, 1)
    return jnp.einsum("nhwc,oc->nhwo", x, W[:, :, 0, 0]) + b


def ref_dw(x, W, b, stride, pad):      # W: (C, 1, K, K), x: NHWC
    C = x.shape[-1]
    w_hwio = jnp.transpose(W, (2, 3, 1, 0))
    y = lax.conv_general_dilated(
        x, w_hwio, (stride, stride), [(pad, pad), (pad, pad)],
        dimension_numbers=("NHWC", "HWIO", "NHWC"), feature_group_count=C)
    return y + b


def reference_forward(x_nchw, params):
    x = jnp.transpose(x_nchw, (0, 2, 3, 1))
    for p in params["blocks"]:
        r = p["ref"]
        if p["kind"] == "replk":
            t = x * r["s0"] + r["b0"]
            t = jax.nn.relu(ref_pointwise(t, r["W1"], r["b1"]))
            lk = ref_dw(t, r["Klk"], r["blk"], 1, r["K_lk"] // 2)
            lk = lk + ref_dw(t, r["Ksm"], r["bsm"], 1, r["K_sm"] // 2)
            lk = jax.nn.relu(lk)
            x = x + ref_pointwise(lk, r["W2"], r["b2"])
        else:
            t = x * r["s0"] + r["b0"]
            t = jax.nn.gelu(ref_pointwise(t, r["W1"], r["b1"]), approximate=False)
            x = x + ref_pointwise(t, r["W2"], r["b2"])
    r = params["transition"]["ref"]
    t = jax.nn.relu(ref_pointwise(x, r["W1"], r["b1"]))
    x = jax.nn.relu(ref_dw(t, r["W2"], r["b2"], 2, 1))
    return jnp.transpose(x, (0, 3, 1, 2))


# ----------------------------------- main -----------------------------------

if __name__ == "__main__":
    # channels list: stage uses channels[1], transition outputs channels[2]
    channels = [4, 8, 16, 32]
    C1, C2 = channels[1], channels[2]
    N, H, W = 2, 16, 16

    key = jax.random.PRNGKey(0)
    kx, kp = jax.random.split(key)
    x = jax.random.normal(kx, (N, C1, H, W), jnp.float32)    # NCHW like PyTorch
    params = make_params(kp, C1, C2, num_blocks=2, lk=29, sk=5,
                         dw_ratio=1, ffn_ratio=4)

    # f32 path: strict correctness check against the pure-JAX reference
    out = jax.block_until_ready(forward(x, params))
    assert out.shape == (N, C2, H // 2, W // 2), out.shape
    ref = reference_forward(x, params)
    np.testing.assert_allclose(np.asarray(out), np.asarray(ref),
                               rtol=2e-3, atol=2e-3)

    # bf16 matmul path (v6e/v7x MXU; depthwise MACs stay f32 for v5e VPU) —
    # loose-tolerance sanity check (bf16 rounding vs f32 reference).
    out_bf16 = jax.block_until_ready(
        forward(x, params, compute_dtype=jnp.bfloat16))
    np.testing.assert_allclose(np.asarray(out_bf16.astype(jnp.float32)),
                               np.asarray(ref), rtol=1e-1, atol=1e-1)

    print("KERNEL_OK")
</pallas_src>

<mosaic_0001>
module attributes {stable_mosaic.version = 11 : i64} {
  func.func @_mm_kernel(%arg0: i32, %arg1: memref<512x8xf32, #tpu.memory_space<vmem>>, %arg2: memref<8x8xf32, #tpu.memory_space<vmem>>, %arg3: memref<1x8xf32, #tpu.memory_space<vmem>>, %arg4: memref<512x8xf32, #tpu.memory_space<vmem>>) attributes {dimension_semantics = [#tpu.dimension_semantics<parallel>], iteration_bounds = array<i64: 1>, scalar_prefetch = 0 : i64, scratch_operands = 0 : i64, tpu.core_type = #tpu.core_type<tc>, window_params = [{transform_indices = @transform_0, window_bounds = array<i64: 512, 8>}, {pipeline_mode = #tpu.pipeline_mode<synchronous>, transform_indices = @transform_1, window_bounds = array<i64: 8, 8>}, {pipeline_mode = #tpu.pipeline_mode<synchronous>, transform_indices = @transform_2, window_bounds = array<i64: 1, 8>}, {transform_indices = @transform_3, window_bounds = array<i64: 512, 8>}]} {
    %c0 = arith.constant 0 : index
    %c0_0 = arith.constant 0 : index
    %0 = vector.load %arg1[%c0, %c0_0] : memref<512x8xf32, #tpu.memory_space<vmem>>, vector<512x8xf32>
    %c0_1 = arith.constant 0 : index
    %c0_2 = arith.constant 0 : index
    %1 = vector.load %arg2[%c0_1, %c0_2] : memref<8x8xf32, #tpu.memory_space<vmem>>, vector<8x8xf32>
    %cst = arith.constant dense<0.000000e+00> : vector<512x8xf32>
    %2 = tpu.matmul %0, %1, %cst {dimension_numbers = #tpu.dot_dimension_numbers<[1], [0], [0], [1], [0, 0, 1, 1], [], []>} : vector<512x8xf32>, vector<8x8xf32>, vector<512x8xf32> -> vector<512x8xf32>
    %c0_3 = arith.constant 0 : index
    %c0_4 = arith.constant 0 : index
    %3 = vector.load %arg3[%c0_3, %c0_4] : memref<1x8xf32, #tpu.memory_space<vmem>>, vector<1x8xf32>
    %4 = vector.broadcast %3 : vector<1x8xf32> to vector<512x8xf32>
    %5 = arith.addf %2, %4 : vector<512x8xf32>
    %cst_5 = arith.constant 0.000000e+00 : f32
    %6 = vector.broadcast %cst_5 : f32 to vector<512x8xf32>
    %7 = arith.maximumf %5, %6 : vector<512x8xf32>
    %c0_6 = arith.constant 0 : index
    %c0_7 = arith.constant 0 : index
    %8 = vector.load %arg4[%c0_6, %c0_7] : memref<512x8xf32, #tpu.memory_space<vmem>>, vector<512x8xf32>
    tpu.vector_store %arg4[%c0_6, %c0_7], %7 {strides = array<i32>} : memref<512x8xf32, #tpu.memory_space<vmem>>, vector<512x8xf32>,
    return
  }
  func.func @transform_0(%arg0: i32) -> (i32, i32) {
    %c0_i32 = arith.constant 0 : i32
    %c0_i32_0 = arith.constant 0 : i32
    return %arg0, %c0_i32 : i32, i32
  }
  func.func @transform_1(%arg0: i32) -> (i32, i32) {
    %c0_i32 = arith.constant 0 : i32
    %c0_i32_0 = arith.constant 0 : i32
    %c0_i32_1 = arith.constant 0 : i32
    return %c0_i32, %c0_i32_0 : i32, i32
  }
  func.func @transform_2(%arg0: i32) -> (i32, i32) {
    %c0_i32 = arith.constant 0 : i32
    %c0_i32_0 = arith.constant 0 : i32
    %c0_i32_1 = arith.constant 0 : i32
    return %c0_i32, %c0_i32_0 : i32, i32
  }
  func.func @transform_3(%arg0: i32) -> (i32, i32) {
    %c0_i32 = arith.constant 0 : i32
    %c0_i32_0 = arith.constant 0 : i32
    return %arg0, %c0_i32 : i32, i32
  }
}

</mosaic_0001>

<llo_original>
// kernel: tpu_custom_call.1
$region0: #{tpu_custom_call.1}
  #allocation0 [shape = 'u32[]', space=smem, size = 0x4, offset = 0x4, fixed_abs, tag = 'smem constant byte address 0x4 - core index']
  #allocation1 [shape = 'u32[72,128]{1,0:T(1,128)}', space=vmem, size = 0x9000, scoped, tag = 'internal scratch']
  %s0 = inlined_call_operand.vmem [shape: f32[512,8], index: 0, kind: input, shape index: {}]
  %s1 = inlined_call_operand.vmem [shape: f32[8,8], index: 1, kind: input, shape index: {}]
  %s2 = inlined_call_operand.vmem [shape: f32[1,8], index: 2, kind: input, shape index: {}]
  %s3 = inlined_call_operand.vmem [shape: f32[512,8], index: 3, kind: output, shape index: {}]
  %s4 = sld [smem:[#allocation0]]
  $region22: #{tpu_custom_call.1} parent=0
    _
  %s6 = ssub.s32 1, %s4
  %s7 = scalar_select 0, %s6, %s4
  // Predicated region
  $region2: #{tpu_custom_call.1} parent=0 // pred_check
    _
  $region3: #{tpu_custom_call.1} parent=0 // pred_check_branch
    %9 = sbr.rel (0) target = $region5
  $region4: #{tpu_custom_call.1} parent=0 // pred_region
    _
  $region5: #{tpu_custom_call.1} parent=0 // pred_fallthru
    _
  // Predicated region
  $region6: #{tpu_custom_call.1} parent=0 // pred_check
    _
  $region7: #{tpu_custom_call.1} parent=0 // pred_check_branch
    %11 = sbr.rel (0) target = $region9
  $region8: #{tpu_custom_call.1} parent=0 // pred_region
    _
  $region9: #{tpu_custom_call.1} parent=0 // pred_fallthru
    _
  // Predicated region
  $region10: #{tpu_custom_call.1} parent=0 // pred_check
    _
  $region11: #{tpu_custom_call.1} parent=0 // pred_check_branch
    %13 = sbr.rel (0) target = $region13
  $region12: #{tpu_custom_call.1} parent=0 // pred_region
    _
  $region13: #{tpu_custom_call.1} parent=0 // pred_fallthru
    _
  %v14 = vld [vmem:[%s0] sm:$0xff]
  %v15 = vld [vmem:[%s0 + $0x8] sm:$0xff]
  %v16 = vld [vmem:[%s0 + $0x10] sm:$0xff]
  %v17 = vld [vmem:[%s0 + $0x18] sm:$0xff]
  %v18 = vld [vmem:[%s0 + $0x20] sm:$0xff]
  %v19 = vld [vmem:[%s0 + $0x28] sm:$0xff]
  %v20 = vld [vmem:[%s0 + $0x30] sm:$0xff]
  %v21 = vld [vmem:[%s0 + $0x38] sm:$0xff]
  %v22 = vld [vmem:[%s0 + $0x40] sm:$0xff]
  %v23 = vld [vmem:[%s0 + $0x48] sm:$0xff]
  %v24 = vld [vmem:[%s0 + $0x50] sm:$0xff]
  %v25 = vld [vmem:[%s0 + $0x58] sm:$0xff]
  %v26 = vld [vmem:[%s0 + $0x60] sm:$0xff]
  %v27 = vld [vmem:[%s0 + $0x68] sm:$0xff]
  %v28 = vld [vmem:[%s0 + $0x70] sm:$0xff]
  %v29 = vld [vmem:[%s0 + $0x78] sm:$0xff]
  %v30 = vld [vmem:[%s0 + $0x80] sm:$0xff]
  %v31 = vld [vmem:[%s0 + $0x88] sm:$0xff]
  %v32 = vld [vmem:[%s0 + $0x90] sm:$0xff]
  %v33 = vld [vmem:[%s0 + $0x98] sm:$0xff]
  %v34 = vld [vmem:[%s0 + $0xa0] sm:$0xff]
  %v35 = vld [vmem:[%s0 + $0xa8] sm:$0xff]
  %v36 = vld [vmem:[%s0 + $0xb0] sm:$0xff]
  %v37 = vld [vmem:[%s0 + $0xb8] sm:$0xff]
  %v38 = vld [vmem:[%s0 + $0xc0] sm:$0xff]
  %v39 = vld [vmem:[%s0 + $0xc8] sm:$0xff]
  %v40 = vld [vmem:[%s0 + $0xd0] sm:$0xff]
  %v41 = vld [vmem:[%s0 + $0xd8] sm:$0xff]
  %v42 = vld [vmem:[%s0 + $0xe0] sm:$0xff]
  %v43 = vld [vmem:[%s0 + $0xe8] sm:$0xff]
  %v44 = vld [vmem:[%s0 + $0xf0] sm:$0xff]
  %v45 = vld [vmem:[%s0 + $0xf8] sm:$0xff]
  %v46 = vld [vmem:[%s0 + $0x100] sm:$0xff]
  %v47 = vld [vmem:[%s0 + $0x108] sm:$0xff]
  %v48 = vld [vmem:[%s0 + $0x110] sm:$0xff]
  %v49 = vld [vmem:[%s0 + $0x118] sm:$0xff]
  %v50 = vld [vmem:[%s0 + $0x120] sm:$0xff]
  %v51 = vld [vmem:[%s0 + $0x128] sm:$0xff]
  %v52 = vld [vmem:[%s0 + $0x130] sm:$0xff]
  %v53 = vld [vmem:[%s0 + $0x138] sm:$0xff]
  %v54 = vld [vmem:[%s0 + $0x140] sm:$0xff]
  %v55 = vld [vmem:[%s0 + $0x148] sm:$0xff]
  %v56 = vld [vmem:[%s0 + $0x150] sm:$0xff]
  %v57 = vld [vmem:[%s0 + $0x158] sm:$0xff]
  %v58 = vld [vmem:[%s0 + $0x160] sm:$0xff]
  %v59 = vld [vmem:[%s0 + $0x168] sm:$0xff]
  %v60 = vld [vmem:[%s0 + $0x170] sm:$0xff]
  %v61 = vld [vmem:[%s0 + $0x178] sm:$0xff]
  %v62 = vld [vmem:[%s0 + $0x180] sm:$0xff]
  %v63 = vld [vmem:[%s0 + $0x188] sm:$0xff]
  %v64 = vld [vmem:[%s0 + $0x190] sm:$0xff]
  %v65 = vld [vmem:[%s0 + $0x198] sm:$0xff]
  %v66 = vld [vmem:[%s0 + $0x1a0] sm:$0xff]
  %v67 = vld [vmem:[%s0 + $0x1a8] sm:$0xff]
  %v68 = vld [vmem:[%s0 + $0x1b0] sm:$0xff]
  %v69 = vld [vmem:[%s0 + $0x1b8] sm:$0xff]
  %v70 = vld [vmem:[%s0 + $0x1c0] sm:$0xff]
  %v71 = vld [vmem:[%s0 + $0x1c8] sm:$0xff]
  %v72 = vld [vmem:[%s0 + $0x1d0] sm:$0xff]
  %v73 = vld [vmem:[%s0 + $0x1d8] sm:$0xff]
  %v74 = vld [vmem:[%s0 + $0x1e0] sm:$0xff]
  %v75 = vld [vmem:[%s0 + $0x1e8] sm:$0xff]
  %v76 = vld [vmem:[%s0 + $0x1f0] sm:$0xff]
  %v77 = vld [vmem:[%s0 + $0x1f8] sm:$0xff]
  %v78 = vld [vmem:[%s1] sm:$0xff]
  %v79 = vld [vmem:[%s2] sm:$0x1]
  %v81 = vperm.slane %v79, 0
  %vm83 = vcmask 64512
  %v85 = vsel %vm83, %v14, 0
  %v88 = vsel %vm83, %v15, 0
  %v91 = vsel %vm83, %v16, 0
  %v94 = vsel %vm83, %v17, 0
  %v97 = vsel %vm83, %v18, 0
  %v100 = vsel %vm83, %v19, 0
  %v103 = vsel %vm83, %v20, 0
  %v106 = vsel %vm83, %v21, 0
  %v109 = vsel %vm83, %v22, 0
  %v112 = vsel %vm83, %v23, 0
  %v115 = vsel %vm83, %v24, 0
  %v118 = vsel %vm83, %v25, 0
  %v121 = vsel %vm83, %v26, 0
  %v124 = vsel %vm83, %v27, 0
  %v127 = vsel %vm83, %v28, 0
  %v130 = vsel %vm83, %v29, 0
  %v133 = vsel %vm83, %v30, 0
  %v136 = vsel %vm83, %v31, 0
  %v139 = vsel %vm83, %v32, 0
  %v142 = vsel %vm83, %v33, 0
  %v145 = vsel %vm83, %v34, 0
  %v148 = vsel %vm83, %v35, 0
  %v151 = vsel %vm83, %v36, 0
  %v154 = vsel %vm83, %v37, 0
  %v157 = vsel %vm83, %v38, 0
  %v160 = vsel %vm83, %v39, 0
  %v163 = vsel %vm83, %v40, 0
  %v166 = vsel %vm83, %v41, 0
  %v169 = vsel %vm83, %v42, 0
  %v172 = vsel %vm83, %v43, 0
  %v175 = vsel %vm83, %v44, 0
  %v178 = vsel %vm83, %v45, 0
  %v181 = vsel %vm83, %v46, 0
  %v184 = vsel %vm83, %v47, 0
  %v187 = vsel %vm83, %v48, 0
  %v190 = vsel %vm83, %v49, 0
  %v193 = vsel %vm83, %v50, 0
  %v196 = vsel %vm83, %v51, 0
  %v199 = vsel %vm83, %v52, 0
  %v202 = vsel %vm83, %v53, 0
  %v205 = vsel %vm83, %v54, 0
  %v208 = vsel %vm83, %v55, 0
  %v211 = vsel %vm83, %v56, 0
  %v214 = vsel %vm83, %v57, 0
  %v217 = vsel %vm83, %v58, 0
  %v220 = vsel %vm83, %v59, 0
  %v223 = vsel %vm83, %v60, 0
  %v226 = vsel %vm83, %v61, 0
  %v229 = vsel %vm83, %v62, 0
  %v232 = vsel %vm83, %v63, 0
  %v235 = vsel %vm83, %v64, 0
  %v238 = vsel %vm83, %v65, 0
  %v241 = vsel %vm83, %v66, 0
  %v244 = vsel %vm83, %v67, 0
  %v247 = vsel %vm83, %v68, 0
  %v250 = vsel %vm83, %v69, 0
  %v253 = vsel %vm83, %v70, 0
  %v256 = vsel %vm83, %v71, 0
  %v259 = vsel %vm83, %v72, 0
  %v262 = vsel %vm83, %v73, 0
  %v265 = vsel %vm83, %v74, 0
  %v268 = vsel %vm83, %v75, 0
  %v271 = vsel %vm83, %v76, 0
  %v274 = vsel %vm83, %v77, 0
  %276 = vmatpush.msra.mxu0 0.0
  %277 = vmatpush.msra.mxu0 0.0
  %278 = vmatpush.msra.mxu0 0.0
  %279 = vmatpush.msra.mxu0 0.0
  %280 = vmatpush.msra.mxu0 0.0
  %281 = vmatpush.msra.mxu0 0.0
  %282 = vmatpush.msra.mxu0 0.0
  %283 = vmatpush.msra.mxu0 0.0
  %284 = vmatpush.msra.mxu0 0.0
  %285 = vmatpush.msra.mxu0 0.0
  %286 = vmatpush.msra.mxu0 0.0
  %287 = vmatpush.msra.mxu0 0.0
  %288 = vmatpush.msra.mxu0 0.0
  %289 = vmatpush.msra.mxu0 0.0
  %290 = vmatpush.msra.mxu0 0.0
  %291 = vmatpush.msra.mxu0 %v78
  %292 = vmatmul.f32.gmra.mxu0 %v85
  %v293 = vpop.f32.mrf.mxu0
  %v294 = vadd.f32 %v81, %v293
  %295 = vmatmul.f32.gmra.mxu0 %v88
  %v296 = vpop.f32.mrf.mxu0
  %v297 = vadd.f32 %v81, %v296
  %298 = vmatmul.f32.gmra.mxu0 %v91
  %v299 = vpop.f32.mrf.mxu0
  %v300 = vadd.f32 %v81, %v299
  %301 = vmatmul.f32.gmra.mxu0 %v94
  %v302 = vpop.f32.mrf.mxu0
  %v303 = vadd.f32 %v81, %v302
  %304 = vmatmul.f32.gmra.mxu0 %v97
  %v305 = vpop.f32.mrf.mxu0
  %v306 = vadd.f32 %v81, %v305
  %307 = vmatmul.f32.gmra.mxu0 %v100
  %v308 = vpop.f32.mrf.mxu0
  %v309 = vadd.f32 %v81, %v308
  %310 = vmatmul.f32.gmra.mxu0 %v103
  %v311 = vpop.f32.mrf.mxu0
  %v312 = vadd.f32 %v81, %v311
  %313 = vmatmul.f32.gmra.mxu0 %v106
  %v314 = vpop.f32.mrf.mxu0
  %v315 = vadd.f32 %v81, %v314
  %316 = vmatmul.f32.gmra.mxu0 %v109
  %v317 = vpop.f32.mrf.mxu0
  %v318 = vadd.f32 %v81, %v317
  %319 = vmatmul.f32.gmra.mxu0 %v112
  %v320 = vpop.f32.mrf.mxu0
  %v321 = vadd.f32 %v81, %v320
  %322 = vmatmul.f32.gmra.mxu0 %v115
  %v323 = vpop.f32.mrf.mxu0
  %v324 = vadd.f32 %v81, %v323
  %325 = vmatmul.f32.gmra.mxu0 %v118
  %v326 = vpop.f32.mrf.mxu0
  %v327 = vadd.f32 %v81, %v326
  %328 = vmatmul.f32.gmra.mxu0 %v121
  %v329 = vpop.f32.mrf.mxu0
  %v330 = vadd.f32 %v81, %v329
  %331 = vmatmul.f32.gmra.mxu0 %v124
  %v332 = vpop.f32.mrf.mxu0
  %v333 = vadd.f32 %v81, %v332
  %334 = vmatmul.f32.gmra.mxu0 %v127
  %v335 = vpop.f32.mrf.mxu0
  %v336 = vadd.f32 %v81, %v335
  %337 = vmatmul.f32.gmra.mxu0 %v130
  %v338 = vpop.f32.mrf.mxu0
  %v339 = vadd.f32 %v81, %v338
  %340 = vmatmul.f32.gmra.mxu0 %v133
  %v341 = vpop.f32.mrf.mxu0
  %v342 = vadd.f32 %v81, %v341
  %343 = vmatmul.f32.gmra.mxu0 %v136
  %v344 = vpop.f32.mrf.mxu0
  %v345 = vadd.f32 %v81, %v344
  %346 = vmatmul.f32.gmra.mxu0 %v139
  %v347 = vpop.f32.mrf.mxu0
  %v348 = vadd.f32 %v81, %v347
  %349 = vmatmul.f32.gmra.mxu0 %v142
  %v350 = vpop.f32.mrf.mxu0
  %v351 = vadd.f32 %v81, %v350
  %352 = vmatmul.f32.gmra.mxu0 %v145
  %v353 = vpop.f32.mrf.mxu0
  %v354 = vadd.f32 %v81, %v353
  %355 = vmatmul.f32.gmra.mxu0 %v148
  %v356 = vpop.f32.mrf.mxu0
  %v357 = vadd.f32 %v81, %v356
  %358 = vmatmul.f32.gmra.mxu0 %v151
  %v359 = vpop.f32.mrf.mxu0
  %v360 = vadd.f32 %v81, %v359
  %361 = vmatmul.f32.gmra.mxu0 %v154
  %v362 = vpop.f32.mrf.mxu0
  %v363 = vadd.f32 %v81, %v362
  %364 = vmatmul.f32.gmra.mxu0 %v157
  %v365 = vpop.f32.mrf.mxu0
  %v366 = vadd.f32 %v81, %v365
  %367 = vmatmul.f32.gmra.mxu0 %v160
  %v368 = vpop.f32.mrf.mxu0
  %v369 = vadd.f32 %v81, %v368
  %370 = vmatmul.f32.gmra.mxu0 %v163
  %v371 = vpop.f32.mrf.mxu0
  %v372 = vadd.f32 %v81, %v371
  %373 = vmatmul.f32.gmra.mxu0 %v166
  %v374 = vpop.f32.mrf.mxu0
  %v375 = vadd.f32 %v81, %v374
  %376 = vmatmul.f32.gmra.mxu0 %v169
  %v377 = vpop.f32.mrf.mxu0
  %v378 = vadd.f32 %v81, %v377
  %379 = vmatmul.f32.gmra.mxu0 %v172
  %v380 = vpop.f32.mrf.mxu0
  %v381 = vadd.f32 %v81, %v380
  %382 = vmatmul.f32.gmra.mxu0 %v175
  %v383 = vpop.f32.mrf.mxu0
  %v384 = vadd.f32 %v81, %v383
  %385 = vmatmul.f32.gmra.mxu0 %v178
  %v386 = vpop.f32.mrf.mxu0
  %v387 = vadd.f32 %v81, %v386
  %388 = vmatmul.f32.gmra.mxu0 %v181
  %v389 = vpop.f32.mrf.mxu0
  %v390 = vadd.f32 %v81, %v389
  %391 = vmatmul.f32.gmra.mxu0 %v184
  %v392 = vpop.f32.mrf.mxu0
  %v393 = vadd.f32 %v81, %v392
  %394 = vmatmul.f32.gmra.mxu0 %v187
  %v395 = vpop.f32.mrf.mxu0
  %v396 = vadd.f32 %v81, %v395
  %397 = vmatmul.f32.gmra.mxu0 %v190
  %v398 = vpop.f32.mrf.mxu0
  %v399 = vadd.f32 %v81, %v398
  %400 = vmatmul.f32.gmra.mxu0 %v193
  %v401 = vpop.f32.mrf.mxu0
  %v402 = vadd.f32 %v81, %v401
  %403 = vmatmul.f32.gmra.mxu0 %v196
  %v404 = vpop.f32.mrf.mxu0
  %v405 = vadd.f32 %v81, %v404
  %406 = vmatmul.f32.gmra.mxu0 %v199
  %v407 = vpop.f32.mrf.mxu0
  %v408 = vadd.f32 %v81, %v407
  %409 = vmatmul.f32.gmra.mxu0 %v202
  %v410 = vpop.f32.mrf.mxu0
  %v411 = vadd.f32 %v81, %v410
  %412 = vmatmul.f32.gmra.mxu0 %v205
  %v413 = vpop.f32.mrf.mxu0
  %v414 = vadd.f32 %v81, %v413
  %415 = vmatmul.f32.gmra.mxu0 %v208
  %v416 = vpop.f32.mrf.mxu0
  %v417 = vadd.f32 %v81, %v416
  %418 = vmatmul.f32.gmra.mxu0 %v211
  %v419 = vpop.f32.mrf.mxu0
  %v420 = vadd.f32 %v81, %v419
  %421 = vmatmul.f32.gmra.mxu0 %v214
  %v422 = vpop.f32.mrf.mxu0
  %v423 = vadd.f32 %v81, %v422
  %424 = vmatmul.f32.gmra.mxu0 %v217
  %v425 = vpop.f32.mrf.mxu0
  %v426 = vadd.f32 %v81, %v425
  %427 = vmatmul.f32.gmra.mxu0 %v220
  %v428 = vpop.f32.mrf.mxu0
  %v429 = vadd.f32 %v81, %v428
  %430 = vmatmul.f32.gmra.mxu0 %v223
  %v431 = vpop.f32.mrf.mxu0
  %v432 = vadd.f32 %v81, %v431
  %433 = vmatmul.f32.gmra.mxu0 %v226
  %v434 = vpop.f32.mrf.mxu0
  %v435 = vadd.f32 %v81, %v434
  %436 = vmatmul.f32.gmra.mxu0 %v229
  %v437 = vpop.f32.mrf.mxu0
  %v438 = vadd.f32 %v81, %v437
  %439 = vmatmul.f32.gmra.mxu0 %v232
  %v440 = vpop.f32.mrf.mxu0
  %v441 = vadd.f32 %v81, %v440
  %442 = vmatmul.f32.gmra.mxu0 %v235
  %v443 = vpop.f32.mrf.mxu0
  %v444 = vadd.f32 %v81, %v443
  %445 = vmatmul.f32.gmra.mxu0 %v238
  %v446 = vpop.f32.mrf.mxu0
  %v447 = vadd.f32 %v81, %v446
  %448 = vmatmul.f32.gmra.mxu0 %v241
  %v449 = vpop.f32.mrf.mxu0
  %v450 = vadd.f32 %v81, %v449
  %451 = vmatmul.f32.gmra.mxu0 %v244
  %v452 = vpop.f32.mrf.mxu0
  %v453 = vadd.f32 %v81, %v452
  %454 = vmatmul.f32.gmra.mxu0 %v247
  %v455 = vpop.f32.mrf.mxu0
  %v456 = vadd.f32 %v81, %v455
  %457 = vmatmul.f32.gmra.mxu0 %v250
  %v458 = vpop.f32.mrf.mxu0
  %v459 = vadd.f32 %v81, %v458
  %460 = vmatmul.f32.gmra.mxu0 %v253
  %v461 = vpop.f32.mrf.mxu0
  %v462 = vadd.f32 %v81, %v461
  %463 = vmatmul.f32.gmra.mxu0 %v256
  %v464 = vpop.f32.mrf.mxu0
  %v465 = vadd.f32 %v81, %v464
  %466 = vmatmul.f32.gmra.mxu0 %v259
  %v467 = vpop.f32.mrf.mxu0
  %v468 = vadd.f32 %v81, %v467
  %469 = vmatmul.f32.gmra.mxu0 %v262
  %v470 = vpop.f32.mrf.mxu0
  %v471 = vadd.f32 %v81, %v470
  %472 = vmatmul.f32.gmra.mxu0 %v265
  %v473 = vpop.f32.mrf.mxu0
  %v474 = vadd.f32 %v81, %v473
  %475 = vmatmul.f32.gmra.mxu0 %v268
  %v476 = vpop.f32.mrf.mxu0
  %v477 = vadd.f32 %v81, %v476
  %478 = vmatmul.f32.gmra.mxu0 %v271
  %v479 = vpop.f32.mrf.mxu0
  %v480 = vadd.f32 %v81, %v479
  %481 = vmatmul.f32.gmra.mxu0 %v274
  %v482 = vpop.f32.mrf.mxu0
  %v483 = vadd.f32 %v81, %v482
  %484 = vdwg.mxu0
  %v485 = vmax.f32 %v294, 0.0
  %v486 = vmax.f32 %v297, 0.0
  %v487 = vmax.f32 %v300, 0.0
  %v488 = vmax.f32 %v303, 0.0
  %v489 = vmax.f32 %v306, 0.0
  %v490 = vmax.f32 %v309, 0.0
  %v491 = vmax.f32 %v312, 0.0
  %v492 = vmax.f32 %v315, 0.0
  %v493 = vmax.f32 %v318, 0.0
  %v494 = vmax.f32 %v321, 0.0
  %v495 = vmax.f32 %v324, 0.0
  %v496 = vmax.f32 %v327, 0.0
  %v497 = vmax.f32 %v330, 0.0
  %v498 = vmax.f32 %v333, 0.0
  %v499 = vmax.f32 %v336, 0.0
  %v500 = vmax.f32 %v339, 0.0
  %v501 = vmax.f32 %v342, 0.0
  %v502 = vmax.f32 %v345, 0.0
  %v503 = vmax.f32 %v348, 0.0
  %v504 = vmax.f32 %v351, 0.0
  %v505 = vmax.f32 %v354, 0.0
  %v506 = vmax.f32 %v357, 0.0
  %v507 = vmax.f32 %v360, 0.0
  %v508 = vmax.f32 %v363, 0.0
  %v509 = vmax.f32 %v366, 0.0
  %v510 = vmax.f32 %v369, 0.0
  %v511 = vmax.f32 %v372, 0.0
  %v512 = vmax.f32 %v375, 0.0
  %v513 = vmax.f32 %v378, 0.0
  %v514 = vmax.f32 %v381, 0.0
  %v515 = vmax.f32 %v384, 0.0
  %v516 = vmax.f32 %v387, 0.0
  %v517 = vmax.f32 %v390, 0.0
  %v518 = vmax.f32 %v393, 0.0
  %v519 = vmax.f32 %v396, 0.0
  %v520 = vmax.f32 %v399, 0.0
  %v521 = vmax.f32 %v402, 0.0
  %v522 = vmax.f32 %v405, 0.0
  %v523 = vmax.f32 %v408, 0.0
  %v524 = vmax.f32 %v411, 0.0
  %v525 = vmax.f32 %v414, 0.0
  %v526 = vmax.f32 %v417, 0.0
  %v527 = vmax.f32 %v420, 0.0
  %v528 = vmax.f32 %v423, 0.0
  %v529 = vmax.f32 %v426, 0.0
  %v530 = vmax.f32 %v429, 0.0
  %v531 = vmax.f32 %v432, 0.0
  %v532 = vmax.f32 %v435, 0.0
  %v533 = vmax.f32 %v438, 0.0
  %v534 = vmax.f32 %v441, 0.0
  %v535 = vmax.f32 %v444, 0.0
  %v536 = vmax.f32 %v447, 0.0
  %v537 = vmax.f32 %v450, 0.0
  %v538 = vmax.f32 %v453, 0.0
  %v539 = vmax.f32 %v456, 0.0
  %v540 = vmax.f32 %v459, 0.0
  %v541 = vmax.f32 %v462, 0.0
  %v542 = vmax.f32 %v465, 0.0
  %v543 = vmax.f32 %v468, 0.0
  %v544 = vmax.f32 %v471, 0.0
  %v545 = vmax.f32 %v474, 0.0
  %v546 = vmax.f32 %v477, 0.0
  %v547 = vmax.f32 %v480, 0.0
  %v548 = vmax.f32 %v483, 0.0
  %549 = vst.msk [vmem:[%s3] sm:$0xff] %vm83, %v485
  %550 = vst.msk [vmem:[%s3 + $0x8] sm:$0xff] %vm83, %v486
  %551 = vst.msk [vmem:[%s3 + $0x10] sm:$0xff] %vm83, %v487
  %552 = vst.msk [vmem:[%s3 + $0x18] sm:$0xff] %vm83, %v488
  %553 = vst.msk [vmem:[%s3 + $0x20] sm:$0xff] %vm83, %v489
  %554 = vst.msk [vmem:[%s3 + $0x28] sm:$0xff] %vm83, %v490
  %555 = vst.msk [vmem:[%s3 + $0x30] sm:$0xff] %vm83, %v491
  %556 = vst.msk [vmem:[%s3 + $0x38] sm:$0xff] %vm83, %v492
  %557 = vst.msk [vmem:[%s3 + $0x40] sm:$0xff] %vm83, %v493
  %558 = vst.msk [vmem:[%s3 + $0x48] sm:$0xff] %vm83, %v494
  %559 = vst.msk [vmem:[%s3 + $0x50] sm:$0xff] %vm83, %v495
  %560 = vst.msk [vmem:[%s3 + $0x58] sm:$0xff] %vm83, %v496
  %561 = vst.msk [vmem:[%s3 + $0x60] sm:$0xff] %vm83, %v497
  %562 = vst.msk [vmem:[%s3 + $0x68] sm:$0xff] %vm83, %v498
  %563 = vst.msk [vmem:[%s3 + $0x70] sm:$0xff] %vm83, %v499
  %564 = vst.msk [vmem:[%s3 + $0x78] sm:$0xff] %vm83, %v500
  %565 = vst.msk [vmem:[%s3 + $0x80] sm:$0xff] %vm83, %v501
  %566 = vst.msk [vmem:[%s3 + $0x88] sm:$0xff] %vm83, %v502
  %567 = vst.msk [vmem:[%s3 + $0x90] sm:$0xff] %vm83, %v503
  %568 = vst.msk [vmem:[%s3 + $0x98] sm:$0xff] %vm83, %v504
  %569 = vst.msk [vmem:[%s3 + $0xa0] sm:$0xff] %vm83, %v505
  %570 = vst.msk [vmem:[%s3 + $0xa8] sm:$0xff] %vm83, %v506
  %571 = vst.msk [vmem:[%s3 + $0xb0] sm:$0xff] %vm83, %v507
  %572 = vst.msk [vmem:[%s3 + $0xb8] sm:$0xff] %vm83, %v508
  %573 = vst.msk [vmem:[%s3 + $0xc0] sm:$0xff] %vm83, %v509
  %574 = vst.msk [vmem:[%s3 + $0xc8] sm:$0xff] %vm83, %v510
  %575 = vst.msk [vmem:[%s3 + $0xd0] sm:$0xff] %vm83, %v511
  %576 = vst.msk [vmem:[%s3 + $0xd8] sm:$0xff] %vm83, %v512
  %577 = vst.msk [vmem:[%s3 + $0xe0] sm:$0xff] %vm83, %v513
  %578 = vst.msk [vmem:[%s3 + $0xe8] sm:$0xff] %vm83, %v514
  %579 = vst.msk [vmem:[%s3 + $0xf0] sm:$0xff] %vm83, %v515
  %580 = vst.msk [vmem:[%s3 + $0xf8] sm:$0xff] %vm83, %v516
  %581 = vst.msk [vmem:[%s3 + $0x100] sm:$0xff] %vm83, %v517
  %582 = vst.msk [vmem:[%s3 + $0x108] sm:$0xff] %vm83, %v518
  %583 = vst.msk [vmem:[%s3 + $0x110] sm:$0xff] %vm83, %v519
  %584 = vst.msk [vmem:[%s3 + $0x118] sm:$0xff] %vm83, %v520
  %585 = vst.msk [vmem:[%s3 + $0x120] sm:$0xff] %vm83, %v521
  %586 = vst.msk [vmem:[%s3 + $0x128] sm:$0xff] %vm83, %v522
  %587 = vst.msk [vmem:[%s3 + $0x130] sm:$0xff] %vm83, %v523
  %588 = vst.msk [vmem:[%s3 + $0x138] sm:$0xff] %vm83, %v524
  %589 = vst.msk [vmem:[%s3 + $0x140] sm:$0xff] %vm83, %v525
  %590 = vst.msk [vmem:[%s3 + $0x148] sm:$0xff] %vm83, %v526
  %591 = vst.msk [vmem:[%s3 + $0x150] sm:$0xff] %vm83, %v527
  %592 = vst.msk [vmem:[%s3 + $0x158] sm:$0xff] %vm83, %v528
  %593 = vst.msk [vmem:[%s3 + $0x160] sm:$0xff] %vm83, %v529
  %594 = vst.msk [vmem:[%s3 + $0x168] sm:$0xff] %vm83, %v530
  %595 = vst.msk [vmem:[%s3 + $0x170] sm:$0xff] %vm83, %v531
  %596 = vst.msk [vmem:[%s3 + $0x178] sm:$0xff] %vm83, %v532
  %597 = vst.msk [vmem:[%s3 + $0x180] sm:$0xff] %vm83, %v533
  %598 = vst.msk [vmem:[%s3 + $0x188] sm:$0xff] %vm83, %v534
  %599 = vst.msk [vmem:[%s3 + $0x190] sm:$0xff] %vm83, %v535
  %600 = vst.msk [vmem:[%s3 + $0x198] sm:$0xff] %vm83, %v536
  %601 = vst.msk [vmem:[%s3 + $0x1a0] sm:$0xff] %vm83, %v537
  %602 = vst.msk [vmem:[%s3 + $0x1a8] sm:$0xff] %vm83, %v538
  %603 = vst.msk [vmem:[%s3 + $0x1b0] sm:$0xff] %vm83, %v539
  %604 = vst.msk [vmem:[%s3 + $0x1b8] sm:$0xff] %vm83, %v540
  %605 = vst.msk [vmem:[%s3 + $0x1c0] sm:$0xff] %vm83, %v541
  %606 = vst.msk [vmem:[%s3 + $0x1c8] sm:$0xff] %vm83, %v542
  %607 = vst.msk [vmem:[%s3 + $0x1d0] sm:$0xff] %vm83, %v543
  %608 = vst.msk [vmem:[%s3 + $0x1d8] sm:$0xff] %vm83, %v544
  %609 = vst.msk [vmem:[%s3 + $0x1e0] sm:$0xff] %vm83, %v545
  %610 = vst.msk [vmem:[%s3 + $0x1e8] sm:$0xff] %vm83, %v546
  %611 = vst.msk [vmem:[%s3 + $0x1f0] sm:$0xff] %vm83, %v547
  %612 = vst.msk [vmem:[%s3 + $0x1f8] sm:$0xff] %vm83, %v548
  // Predicated region
  $region14: #{tpu_custom_call.1} parent=0 // pred_check
    _
  $region15: #{tpu_custom_call.1} parent=0 // pred_check_branch
    %614 = sbr.rel (0) target = $region17
  $region16: #{tpu_custom_call.1} parent=0 // pred_region
    _
  $region17: #{tpu_custom_call.1} parent=0 // pred_fallthru
    _
  // Predicated region
  $region18: #{tpu_custom_call.1} parent=0 // pred_check
    _
  $region19: #{tpu_custom_call.1} parent=0 // pred_check_branch
    %616 = sbr.rel (0) target = $region21
  $region20: #{tpu_custom_call.1} parent=0 // pred_region
    _
  $region21: #{tpu_custom_call.1} parent=0 // pred_fallthru
    _

</llo_original>
